<compile_context>
chip_gen: v7x
topology: tpu7x:2x2x1
jax: 0.10.0
libtpu: 0.0.40
codegen_flags: <defaults>
</compile_context>

<pallas_src>
import functools

import numpy as np
import jax
import jax.numpy as jnp
from jax import lax
from jax.experimental import pallas as pl
from jax.experimental.pallas import tpu as pltpu

EPS = 1e-5          # PyTorch BatchNorm2d default eps
EXPANSION = 4
LANE = 128


# ----------------------------------------------------------------------------
# helpers
# ----------------------------------------------------------------------------
def _round_up(x, m):
    return ((x + m - 1) // m) * m


def _tpu_budget():
    # Generation-aware VMEM budget / default row tile:
    #   v5e / v6e: 128 MiB physical VMEM -> 64 MiB scoped, big row tiles.
    #   v7x      :  64 MiB physical      -> 32 MiB scoped, moderate tiles.
    try:
        cap = int(pltpu.get_tpu_info().vmem_capacity_bytes)
    except Exception:  # pragma: no cover - conservative fallback
        return 32 * 1024 * 1024, 1024
    if cap >= 100 * 1024 * 1024:
        return 64 * 1024 * 1024, 2048
    return 32 * 1024 * 1024, 1024


_VMEM_LIMIT, _DEFAULT_TILE_M = _tpu_budget()


def _cparams():
    # single grid axis, independent tiles -> "parallel" (megacore on v7x)
    return pltpu.CompilerParams(
        dimension_semantics=("parallel",),
        vmem_limit_bytes=_VMEM_LIMIT)


def _row_spec(tile_m, c):
    return pl.BlockSpec((tile_m, c), lambda i: (i, 0))


def _bcast_spec(shape):
    nd = len(shape)
    return pl.BlockSpec(tuple(shape), lambda i, _nd=nd: (0,) * _nd)


def _affine_from_stats(ssum, ssq, count, gamma, beta):
    # per-channel scale/shift from sum & sum-of-squares (tiny XLA op, f32).
    # TODO(synk): E[x^2]-E[x]^2 in f32 can cancel for |mean| >> std; a
    # mean-shifted (Welford-style) accumulation would be more robust.
    mean = ssum / count
    var = jnp.maximum(ssq / count - mean * mean, 0.0)
    scale = gamma.reshape(-1) * lax.rsqrt(var + EPS)
    shift = beta.reshape(-1) - mean * scale
    return (scale.reshape(1, -1).astype(jnp.float32),
            shift.reshape(1, -1).astype(jnp.float32))


def _pad_w2d(w, rows, cols):
    return jnp.pad(w, ((0, rows - w.shape[0]),
                       (0, cols - w.shape[1]))).astype(jnp.bfloat16)


def _pad_cvec(v, cols):
    v = jnp.asarray(v, jnp.float32).reshape(1, -1)
    return jnp.pad(v, ((0, 0), (0, cols - v.shape[1])))


# ----------------------------------------------------------------------------
# Pallas kernels
# ----------------------------------------------------------------------------
def _conv1_kernel(x_ref, w_ref, y_ref, s_ref):
    # 1x1 conv on one row-tile.  Emits pre-BN y1 (bf16) AND per-channel
    # (sum, sum-of-squares) so the matmul never has to be redone.
    y = jnp.dot(x_ref[...], w_ref[...], preferred_element_type=jnp.float32)
    y_ref[...] = y.astype(y_ref.dtype)
    s_ref[0] = jnp.concatenate(
        [jnp.sum(y, axis=0, keepdims=True),
         jnp.sum(y * y, axis=0, keepdims=True)], axis=0)


def _conv2_kernel(xp_ref, sc1_ref, sh1_ref, w_ref, y_ref, s_ref, *,
                  H, W, Ho, Wo, stride):
    # Fused: BN1-apply + ReLU (with halo zero mask so the spatial padding of
    # the pre-BN y1 stays zero after the affine), im2col, and a single matmul
    # with K = 9*Cmid (fills the 256-wide MXU, one result drain instead of 9).
    xp = xp_ref[...].astype(jnp.float32)                 # (1, H+2, W+2, C)
    o1 = jnp.maximum(xp * sc1_ref[...] + sh1_ref[...], 0.0)
    hh = lax.broadcasted_iota(jnp.int32, o1.shape, 1)
    ww = lax.broadcasted_iota(jnp.int32, o1.shape, 2)
    interior = (hh >= 1) & (hh <= H) & (ww >= 1) & (ww <= W)
    o1 = jnp.where(interior, o1, 0.0).astype(jnp.bfloat16)

    cin = o1.shape[-1]
    cols = []
    for kh in range(3):
        rows = o1[:, kh:kh + stride * (Ho - 1) + 1:stride, :, :]
        for kw in range(3):
            patch = rows[:, :, kw:kw + stride * (Wo - 1) + 1:stride, :]
            cols.append(patch.reshape(Ho * Wo, cin))
    patches = jnp.concatenate(cols, axis=-1)             # (Ho*Wo, 9*C), lane-aligned
    acc = jnp.dot(patches, w_ref[...], preferred_element_type=jnp.float32)

    y_ref[0] = acc.astype(y_ref.dtype)                   # pre-BN y2 stored bf16
    s_ref[0] = jnp.concatenate(
        [jnp.sum(acc, axis=0, keepdims=True),
         jnp.sum(acc * acc, axis=0, keepdims=True)], axis=0)


def _o2_tile(y2_ref, sc2_ref, sh2_ref, tile_m, m_valid):
    # BN2-apply + ReLU on a bf16 y2 tile (f32 math), masking padded rows so
    # they contribute zero to the downstream statistics.
    o2 = jnp.maximum(
        y2_ref[...].astype(jnp.float32) * sc2_ref[...] + sh2_ref[...], 0.0)
    if m_valid is not None:
        row = pl.program_id(0) * tile_m + lax.broadcasted_iota(
            jnp.int32, (tile_m, 1), 0)
        o2 = jnp.where(row < m_valid, o2, 0.0)
    return o2


def _tail_stats_conv_kernel(y2_ref, sc2_ref, sh2_ref, w3_ref, xs_ref, ws_ref,
                            y3_ref, ysc_ref, s_ref, *, tile_m, m_valid):
    # conv3 + shortcut conv done ONCE; pre-BN results stored bf16 + stats.
    o2 = _o2_tile(y2_ref, sc2_ref, sh2_ref, tile_m, m_valid)
    y3 = jnp.dot(o2.astype(jnp.bfloat16), w3_ref[...],
                 preferred_element_type=jnp.float32)
    ysc = jnp.dot(xs_ref[...], ws_ref[...], preferred_element_type=jnp.float32)
    y3_ref[...] = y3.astype(y3_ref.dtype)
    ysc_ref[...] = ysc.astype(ysc_ref.dtype)
    s_ref[0] = jnp.concatenate(
        [jnp.sum(y3, axis=0, keepdims=True),
         jnp.sum(y3 * y3, axis=0, keepdims=True),
         jnp.sum(ysc, axis=0, keepdims=True),
         jnp.sum(ysc * ysc, axis=0, keepdims=True)], axis=0)


def _tail_stats_id_kernel(y2_ref, sc2_ref, sh2_ref, w3_ref,
                          y3_ref, s_ref, *, tile_m, m_valid):
    o2 = _o2_tile(y2_ref, sc2_ref, sh2_ref, tile_m, m_valid)
    y3 = jnp.dot(o2.astype(jnp.bfloat16), w3_ref[...],
                 preferred_element_type=jnp.float32)
    y3_ref[...] = y3.astype(y3_ref.dtype)
    s_ref[0] = jnp.concatenate(
        [jnp.sum(y3, axis=0, keepdims=True),
         jnp.sum(y3 * y3, axis=0, keepdims=True)], axis=0)


def _tail_apply_conv_kernel(y3_ref, ysc_ref, sc3_ref, sh3_ref, scs_ref,
                            shs_ref, o_ref):
    # Pure element-wise: BN3-apply + shortcut-BN-apply + add + ReLU.
    out = (y3_ref[...].astype(jnp.float32) * sc3_ref[...] + sh3_ref[...]
           + ysc_ref[...].astype(jnp.float32) * scs_ref[...] + shs_ref[...])
    o_ref[...] = jnp.maximum(out, 0.0).astype(o_ref.dtype)


def _tail_apply_id_kernel(y3_ref, xs_ref, sc3_ref, sh3_ref, o_ref):
    # identity shortcut: add the (bf16) input tile directly.
    out = (y3_ref[...].astype(jnp.float32) * sc3_ref[...] + sh3_ref[...]
           + xs_ref[...].astype(jnp.float32))
    o_ref[...] = jnp.maximum(out, 0.0).astype(o_ref.dtype)


# ----------------------------------------------------------------------------
# pallas_call wrappers
# ----------------------------------------------------------------------------
def conv1_y_stats(x_flat, w, tile_m):
    mp, cin = x_flat.shape
    cout = w.shape[1]
    g = mp // tile_m
    return pl.pallas_call(
        _conv1_kernel,
        out_shape=(jax.ShapeDtypeStruct((mp, cout), jnp.bfloat16),
                   jax.ShapeDtypeStruct((g, 2, cout), jnp.float32)),
        grid=(g,),
        in_specs=[_row_spec(tile_m, cin), _bcast_spec((cin, cout))],
        out_specs=(_row_spec(tile_m, cout),
                   pl.BlockSpec((1, 2, cout), lambda i: (i, 0, 0))),
        compiler_params=_cparams(),
    )(x_flat, w)


def conv2_y_stats(y1p, sc1, sh1, w9, stride, H, W, Ho, Wo):
    # TODO(synk): for large H*W*C, tile over output-row blocks with a 2-row
    # halo (manual DMA) instead of whole images to bound VMEM on v7x.
    n, hp2, wp2, cin = y1p.shape
    cout = w9.shape[-1]
    kern = functools.partial(_conv2_kernel, H=H, W=W, Ho=Ho, Wo=Wo,
                             stride=stride)
    return pl.pallas_call(
        kern,
        out_shape=(jax.ShapeDtypeStruct((n, Ho * Wo, cout), jnp.bfloat16),
                   jax.ShapeDtypeStruct((n, 2, cout), jnp.float32)),
        grid=(n,),
        in_specs=[pl.BlockSpec((1, hp2, wp2, cin), lambda b: (b, 0, 0, 0)),
                  _bcast_spec((1, cin)), _bcast_spec((1, cin)),
                  _bcast_spec((9 * cin, cout))],
        out_specs=(pl.BlockSpec((1, Ho * Wo, cout), lambda b: (b, 0, 0)),
                   pl.BlockSpec((1, 2, cout), lambda b: (b, 0, 0))),
        compiler_params=_cparams(),
    )(y1p, sc1, sh1, w9)


def tail_stats(y2_flat, sc2, sh2, w3, xs_flat, ws, tile_m, m_valid):
    mp, cmid = y2_flat.shape
    cout = w3.shape[1]
    g = mp // tile_m
    mv = None if mp == m_valid else m_valid
    if ws is not None:
        cin_s = xs_flat.shape[1]
        kern = functools.partial(_tail_stats_conv_kernel,
                                 tile_m=tile_m, m_valid=mv)
        in_specs = [_row_spec(tile_m, cmid), _bcast_spec((1, cmid)),
                    _bcast_spec((1, cmid)), _bcast_spec((cmid, cout)),
                    _row_spec(tile_m, cin_s), _bcast_spec((cin_s, cout))]
        out_shape = (jax.ShapeDtypeStruct((mp, cout), jnp.bfloat16),
                     jax.ShapeDtypeStruct((mp, cout), jnp.bfloat16),
                     jax.ShapeDtypeStruct((g, 4, cout), jnp.float32))
        out_specs = (_row_spec(tile_m, cout), _row_spec(tile_m, cout),
                     pl.BlockSpec((1, 4, cout), lambda i: (i, 0, 0)))
        args = (y2_flat, sc2, sh2, w3, xs_flat, ws)
    else:
        kern = functools.partial(_tail_stats_id_kernel,
                                 tile_m=tile_m, m_valid=mv)
        in_specs = [_row_spec(tile_m, cmid), _bcast_spec((1, cmid)),
                    _bcast_spec((1, cmid)), _bcast_spec((cmid, cout))]
        out_shape = (jax.ShapeDtypeStruct((mp, cout), jnp.bfloat16),
                     jax.ShapeDtypeStruct((g, 2, cout), jnp.float32))
        out_specs = (_row_spec(tile_m, cout),
                     pl.BlockSpec((1, 2, cout), lambda i: (i, 0, 0)))
        args = (y2_flat, sc2, sh2, w3)
    return pl.pallas_call(
        kern, out_shape=out_shape, grid=(g,), in_specs=in_specs,
        out_specs=out_specs, compiler_params=_cparams())(*args)


def tail_apply_conv(y3, ysc, sc3, sh3, scs, shs, tile_m):
    mp, cout = y3.shape
    g = mp // tile_m
    return pl.pallas_call(
        _tail_apply_conv_kernel,
        out_shape=jax.ShapeDtypeStruct((mp, cout), jnp.float32),
        grid=(g,),
        in_specs=[_row_spec(tile_m, cout), _row_spec(tile_m, cout),
                  _bcast_spec((1, cout)), _bcast_spec((1, cout)),
                  _bcast_spec((1, cout)), _bcast_spec((1, cout))],
        out_specs=_row_spec(tile_m, cout),
        compiler_params=_cparams(),
    )(y3, ysc, sc3, sh3, scs, shs)


def tail_apply_id(y3, xs_flat, sc3, sh3, tile_m):
    mp, cout = y3.shape
    g = mp // tile_m
    return pl.pallas_call(
        _tail_apply_id_kernel,
        out_shape=jax.ShapeDtypeStruct((mp, cout), jnp.float32),
        grid=(g,),
        in_specs=[_row_spec(tile_m, cout), _row_spec(tile_m, cout),
                  _bcast_spec((1, cout)), _bcast_spec((1, cout))],
        out_specs=_row_spec(tile_m, cout),
        compiler_params=_cparams(),
    )(y3, xs_flat, sc3, sh3)


# ----------------------------------------------------------------------------
# Bottleneck forward (NCHW in / NCHW out, like the PyTorch module)
# ----------------------------------------------------------------------------
def bottleneck_forward(x_nchw, params, in_planes, planes, stride=1,
                       tile_m=None):
    if tile_m is None:
        tile_m = _DEFAULT_TILE_M
    out_planes = EXPANSION * planes
    use_shortcut = (stride != 1) or (in_planes != out_planes)

    cin_p = _round_up(in_planes, LANE)
    cmid_p = _round_up(planes, LANE)
    cout_p = _round_up(out_planes, LANE)

    x = jnp.transpose(x_nchw, (0, 2, 3, 1)).astype(jnp.float32)   # NCHW -> NHWC
    N, H, W, _ = x.shape
    Ho = (H - 1) // stride + 1
    Wo = (W - 1) // stride + 1
    M1 = N * H * W
    M2 = N * Ho * Wo

    # lane-dense channel padding (multiple of 128); activations in bf16.
    xb = jnp.pad(x, ((0, 0), (0, 0), (0, 0),
                     (0, cin_p - in_planes))).astype(jnp.bfloat16)

    w1 = _pad_w2d(params['w1'], cin_p, cmid_p)
    w2 = jnp.pad(params['w2'], ((0, 0), (0, cmid_p - planes),
                                (0, cmid_p - planes)))
    w2 = w2.reshape(9 * cmid_p, cmid_p).astype(jnp.bfloat16)       # K = 9*Cmid
    w3 = _pad_w2d(params['w3'], cmid_p, cout_p)
    g1, b1 = _pad_cvec(params['g1'], cmid_p), _pad_cvec(params['b1'], cmid_p)
    g2, b2 = _pad_cvec(params['g2'], cmid_p), _pad_cvec(params['b2'], cmid_p)
    g3, b3 = _pad_cvec(params['g3'], cout_p), _pad_cvec(params['b3'], cout_p)

    # ---- conv1 (1x1): single MXU pass, emits pre-BN y1 + BN1 stats ---------
    tm1 = _round_up(min(tile_m, M1), 16)          # 16: bf16 sublane packing
    M1p = _round_up(M1, tm1)
    x_flat = xb.reshape(M1, cin_p)
    if M1p != M1:
        x_flat = jnp.pad(x_flat, ((0, M1p - M1), (0, 0)))
    y1, s1p = conv1_y_stats(x_flat, w1, tm1)
    s1 = jnp.sum(s1p, axis=0)
    sc1, sh1 = _affine_from_stats(s1[0], s1[1], M1, g1, b1)

    # ---- conv2 (3x3, stride, pad=1): BN1-apply+ReLU fused in-kernel ---------
    # Spatial halo pad of the *pre-BN* y1 (bf16); the kernel re-zeroes the halo
    # after the affine.  (The separate BN1-apply pass over o1 is gone.)
    y1p = jnp.pad(y1[:M1].reshape(N, H, W, cmid_p),
                  ((0, 0), (1, 1), (1, 1), (0, 0)))
    y2, s2p = conv2_y_stats(y1p, sc1, sh1, w2, stride, H, W, Ho, Wo)
    s2 = jnp.sum(s2p, axis=0)
    sc2, sh2 = _affine_from_stats(s2[0], s2[1], M2, g2, b2)

    tm2 = _round_up(min(tile_m, M2), 16)
    M2p = _round_up(M2, tm2)
    y2_flat = y2.reshape(M2, cmid_p)
    if M2p != M2:
        y2_flat = jnp.pad(y2_flat, ((0, M2p - M2), (0, 0)))

    # shortcut input (flattened; strided subsample only when stride > 1)
    if stride == 1:
        xs_flat = x_flat                                   # M1 == M2, reuse
    else:
        # TODO(synk): express this strided gather through the shortcut
        # BlockSpec index_map instead of an XLA slice.
        xs_flat = xb[:, ::stride, ::stride, :].reshape(M2, cin_p)
        if M2p != M2:
            xs_flat = jnp.pad(xs_flat, ((0, M2p - M2), (0, 0)))

    # ---- conv3 (1x1) + shortcut: matmuls once (stats pass), apply is ew ----
    if use_shortcut:
        ws = _pad_w2d(params['ws'], cin_p, cout_p)
        gs, bs = _pad_cvec(params['gs'], cout_p), _pad_cvec(params['bs'], cout_p)
        y3, ysc, s34p = tail_stats(y2_flat, sc2, sh2, w3, xs_flat, ws, tm2, M2)
        s34 = jnp.sum(s34p, axis=0)
        sc3, sh3 = _affine_from_stats(s34[0], s34[1], M2, g3, b3)
        scs, shs = _affine_from_stats(s34[2], s34[3], M2, gs, bs)
        out = tail_apply_conv(y3, ysc, sc3, sh3, scs, shs, tm2)
    else:
        y3, s3p = tail_stats(y2_flat, sc2, sh2, w3, None, None, tm2, M2)
        s3 = jnp.sum(s3p, axis=0)
        sc3, sh3 = _affine_from_stats(s3[0], s3[1], M2, g3, b3)
        out = tail_apply_id(y3, xs_flat, sc3, sh3, tm2)

    out = out[:M2, :out_planes].reshape(N, Ho, Wo, out_planes)
    return jnp.transpose(out, (0, 3, 1, 2))                # NHWC -> NCHW


# ----------------------------------------------------------------------------
# deterministic parameter init (shapes from the nn.Module __init__)
# ----------------------------------------------------------------------------
def init_params(key, in_planes, planes, stride=1):
    out_planes = EXPANSION * planes
    use_shortcut = (stride != 1) or (in_planes != out_planes)
    ks = jax.random.split(key, 12)

    def w(k, shape, scale=0.1):
        return scale * jax.random.normal(k, shape, jnp.float32)

    p = {
        'w1': w(ks[0], (in_planes, planes)),           # conv1 1x1 (Cin, Cout)
        'g1': 1.0 + w(ks[1], (planes,)),
        'b1': w(ks[2], (planes,)),
        'w2': w(ks[3], (9, planes, planes)),           # conv2 3x3 (kh*3+kw, Cin, Cout)
        'g2': 1.0 + w(ks[4], (planes,)),
        'b2': w(ks[5], (planes,)),
        'w3': w(ks[6], (planes, out_planes)),          # conv3 1x1
        'g3': 1.0 + w(ks[7], (out_planes,)),
        'b3': w(ks[8], (out_planes,)),
    }
    if use_shortcut:
        p['ws'] = w(ks[9], (in_planes, out_planes))    # shortcut 1x1
        p['gs'] = 1.0 + w(ks[10], (out_planes,))
        p['bs'] = w(ks[11], (out_planes,))
    return p
    # TODO(synk): BatchNorm running-stat (momentum) buffer updates are not
    # modeled; they do not affect the training-mode forward output.


# ----------------------------------------------------------------------------
# reference (independent conv ops; mirrors the kernels' bf16 operand rounding)
# ----------------------------------------------------------------------------
def ref_forward(x_nchw, params, in_planes, planes, stride=1):
    out_planes = EXPANSION * planes
    use_shortcut = (stride != 1) or (in_planes != out_planes)
    bf16, f32 = jnp.bfloat16, jnp.float32

    x = jnp.transpose(x_nchw, (0, 2, 3, 1)).astype(f32)
    xb = x.astype(bf16)

    def affine(y, g, b):                         # training-mode BN over N,H,W
        yf = y.reshape(-1, y.shape[-1])
        mean = yf.mean(axis=0)
        var = jnp.maximum((yf * yf).mean(axis=0) - mean * mean, 0.0)
        scale = g.reshape(-1) * lax.rsqrt(var + EPS)
        shift = b.reshape(-1) - mean * scale
        return scale, shift

    y1 = jnp.einsum('nhwc,cd->nhwd', xb, params['w1'].astype(bf16),
                    preferred_element_type=f32)
    sc1, sh1 = affine(y1, params['g1'], params['b1'])
    o1 = jnp.maximum(y1.astype(bf16).astype(f32) * sc1 + sh1, 0.0).astype(bf16)

    w2 = params['w2'].reshape(3, 3, planes, planes).astype(bf16)
    y2 = lax.conv_general_dilated(o1, w2, window_strides=(stride, stride),
                                  padding=((1, 1), (1, 1)),
                                  dimension_numbers=('NHWC', 'HWIO', 'NHWC'),
                                  preferred_element_type=f32)
    sc2, sh2 = affine(y2, params['g2'], params['b2'])
    o2 = jnp.maximum(y2.astype(bf16).astype(f32) * sc2 + sh2, 0.0).astype(bf16)

    y3 = jnp.einsum('nhwc,cd->nhwd', o2, params['w3'].astype(bf16),
                    preferred_element_type=f32)
    sc3, sh3 = affine(y3, params['g3'], params['b3'])
    out3 = y3.astype(bf16).astype(f32) * sc3 + sh3

    xs = xb[:, ::stride, ::stride, :]
    if use_shortcut:
        ysc = jnp.einsum('nhwc,cd->nhwd', xs, params['ws'].astype(bf16),
                         preferred_element_type=f32)
        scs, shs = affine(ysc, params['gs'], params['bs'])
        shortcut = ysc.astype(bf16).astype(f32) * scs + shs
    else:
        shortcut = xs.astype(f32)

    out = jnp.maximum(out3 + shortcut, 0.0)
    return jnp.transpose(out, (0, 3, 1, 2))


# ----------------------------------------------------------------------------
if __name__ == "__main__":
    root = jax.random.PRNGKey(0)

    configs = [
        # (N, in_planes, planes, H, W, stride)
        (2, 4, 4, 16, 16, 1),     # conv-shortcut path (in_planes != 4*planes)
        (2, 16, 4, 16, 16, 1),    # identity-shortcut path
    ]
    for idx, (N, in_planes, planes, H, W, stride) in enumerate(configs):
        kx, kp = jax.random.split(jax.random.fold_in(root, idx))
        x = jax.random.normal(kx, (N, in_planes, H, W), jnp.float32)
        params = init_params(kp, in_planes, planes, stride)

        # small tile_m so the row-tiled grid (G>1) path is actually exercised.
        out = bottleneck_forward(x, params, in_planes, planes, stride,
                                 tile_m=128)
        out = jax.block_until_ready(out)

        ref = ref_forward(x, params, in_planes, planes, stride)
        Ho = (H - 1) // stride + 1
        Wo = (W - 1) // stride + 1
        assert out.shape == (N, EXPANSION * planes, Ho, Wo)
        np.testing.assert_allclose(np.asarray(out), np.asarray(ref),
                                   atol=2e-3, rtol=2e-3)

    print("KERNEL_OK")
</pallas_src>

<mosaic_0001>
module attributes {stable_mosaic.version = 11 : i64} {
  func.func @_conv1_kernel(%arg0: i32, %arg1: memref<128x128xbf16, #tpu.memory_space<vmem>>, %arg2: memref<128x128xbf16, #tpu.memory_space<vmem>>, %arg3: memref<128x128xbf16, #tpu.memory_space<vmem>>, %arg4: memref<1x2x128xf32, #tpu.memory_space<vmem>>) attributes {dimension_semantics = [#tpu.dimension_semantics<parallel>], iteration_bounds = array<i64: 4>, scalar_prefetch = 0 : i64, scratch_operands = 0 : i64, tpu.core_type = #tpu.core_type<tc>, window_params = [{transform_indices = @transform_0, window_bounds = array<i64: 128, 128>}, {pipeline_mode = #tpu.pipeline_mode<synchronous>, transform_indices = @transform_1, window_bounds = array<i64: 128, 128>}, {transform_indices = @transform_2, window_bounds = array<i64: 128, 128>}, {transform_indices = @transform_3, window_bounds = array<i64: 1, 2, 128>}]} {
    %c0 = arith.constant 0 : index
    %c0_0 = arith.constant 0 : index
    %0 = vector.load %arg1[%c0, %c0_0] : memref<128x128xbf16, #tpu.memory_space<vmem>>, vector<128x128xbf16>
    %c0_1 = arith.constant 0 : index
    %c0_2 = arith.constant 0 : index
    %1 = vector.load %arg2[%c0_1, %c0_2] : memref<128x128xbf16, #tpu.memory_space<vmem>>, vector<128x128xbf16>
    %cst = arith.constant dense<0.000000e+00> : vector<128x128xf32>
    %2 = tpu.matmul %0, %1, %cst {dimension_numbers = #tpu.dot_dimension_numbers<[1], [0], [0], [1], [0, 0, 1, 1], [], []>} : vector<128x128xbf16>, vector<128x128xbf16>, vector<128x128xf32> -> vector<128x128xf32>
    %3 = arith.truncf %2 : vector<128x128xf32> to vector<128x128xbf16>
    %c0_3 = arith.constant 0 : index
    %c0_4 = arith.constant 0 : index
    %4 = vector.load %arg3[%c0_3, %c0_4] : memref<128x128xbf16, #tpu.memory_space<vmem>>, vector<128x128xbf16>
    tpu.vector_store %arg3[%c0_3, %c0_4], %3 {strides = array<i32>} : memref<128x128xbf16, #tpu.memory_space<vmem>>, vector<128x128xbf16>,
    %cst_5 = arith.constant dense<0.000000e+00> : vector<128xf32>
    %5 = vector.multi_reduction <add>, %2, %cst_5 [0] : vector<128x128xf32> to vector<128xf32>
    %6 = vector.shape_cast %5 : vector<128xf32> to vector<1x128xf32>
    %7 = arith.mulf %2, %2 : vector<128x128xf32>
    %cst_6 = arith.constant dense<0.000000e+00> : vector<128xf32>
    %8 = vector.multi_reduction <add>, %7, %cst_6 [0] : vector<128x128xf32> to vector<128xf32>
    %9 = vector.shape_cast %8 : vector<128xf32> to vector<1x128xf32>
    %10 = tpu.concatenate %6, %9 in 0 : vector<1x128xf32>, vector<1x128xf32> -> vector<2x128xf32>
    %c0_7 = arith.constant 0 : index
    %c0_8 = arith.constant 0 : index
    %c0_9 = arith.constant 0 : index
    %11 = vector.load %arg4[%c0_7, %c0_8, %c0_9] : memref<1x2x128xf32, #tpu.memory_space<vmem>>, vector<1x2x128xf32>
    %12 = vector.shape_cast %11 : vector<1x2x128xf32> to vector<2x128xf32>
    %13 = vector.shape_cast %10 : vector<2x128xf32> to vector<1x2x128xf32>
    tpu.vector_store %arg4[%c0_7, %c0_8, %c0_9], %13 {strides = array<i32>} : memref<1x2x128xf32, #tpu.memory_space<vmem>>, vector<1x2x128xf32>,
    return
  }
  func.func @transform_0(%arg0: i32) -> (i32, i32) {
    %c0_i32 = arith.constant 0 : i32
    %c0_i32_0 = arith.constant 0 : i32
    return %arg0, %c0_i32 : i32, i32
  }
  func.func @transform_1(%arg0: i32) -> (i32, i32) {
    %c0_i32 = arith.constant 0 : i32
    %c0_i32_0 = arith.constant 0 : i32
    %c0_i32_1 = arith.constant 0 : i32
    return %c0_i32, %c0_i32_0 : i32, i32
  }
  func.func @transform_2(%arg0: i32) -> (i32, i32) {
    %c0_i32 = arith.constant 0 : i32
    %c0_i32_0 = arith.constant 0 : i32
    return %arg0, %c0_i32 : i32, i32
  }
  func.func @transform_3(%arg0: i32) -> (i32, i32, i32) {
    %c0_i32 = arith.constant 0 : i32
    %c0_i32_0 = arith.constant 0 : i32
    %c0_i32_1 = arith.constant 0 : i32
    return %arg0, %c0_i32, %c0_i32_0 : i32, i32, i32
  }
}

</mosaic_0001>

<llo_original>
// kernel: tpu_custom_call.1
$region0: #{tpu_custom_call.1}
  #allocation0 [shape = 'u32[]', space=smem, size = 0x4, offset = 0x4, fixed_abs, tag = 'smem constant byte address 0x4 - core index']
  #allocation1 [shape = 'u32[144,128]{1,0:T(1,128)}', space=vmem, size = 0x12000, scoped, tag = 'internal scratch']
  %s0 = inlined_call_operand.hbm [shape: bf16[512,128], index: 0, kind: input, shape index: {}]
  %s1 = inlined_call_operand.hbm [shape: bf16[128,128], index: 1, kind: input, shape index: {}]
  %s2 = inlined_call_operand.hbm [shape: bf16[512,128], index: 2, kind: output, shape index: {0}]
  %s3 = inlined_call_operand.hbm [shape: f32[4,2,128], index: 3, kind: output, shape index: {1}]
  %4 = xla_tuple %s2, %s3
  %s5 = sld [smem:[#allocation0]]
  $region57: #{tpu_custom_call.1} parent=0
    _
  %s7 = ssub.s32 1, %s5
  %s8 = scalar_select 0, %s7, %s5
  $region1: #{tpu_custom_call.1} parent=0
    #allocation2 [shape = 'u8[65536]{0}', space=vmem, size = 0x10000, scoped, tag = 'input window, operand 0']
    #allocation3 [shape = 's32[2]{0}', space=sflag, size = 0x8, scoped, tag = 'scoped memory for tpu_custom_call.1']
    #allocation4 [shape = 's32[2]{0}', space=sflag, size = 0x8, scoped, tag = 'scoped memory for tpu_custom_call.1']
    #allocation5 [shape = 'u8[32768]{0}', space=vmem, size = 0x8000, scoped, tag = 'input window, operand 1, single buffered']
    #allocation6 [shape = 's32[1]{0}', space=sflag, size = 0x4, scoped, tag = 'scoped memory for tpu_custom_call.1']
    #allocation7 [shape = 'u8[65536]{0}', space=vmem, size = 0x10000, scoped, tag = 'output window, operand 0']
    #allocation8 [shape = 'u8[2048]{0}', space=vmem, size = 0x800, scoped, tag = 'output window, operand 1']
    #allocation9 [shape = 's32[2]{0}', space=sflag, size = 0x8, scoped, tag = 'scoped memory for tpu_custom_call.1']
    %9 = vsyncpa [#allocation3], 0
    %s10 = scalar_lea.sflag [#allocation3], 1
    %11 = vsyncpa %s10, 0
    %12 = vsyncpa [#allocation6], 0
    %13 = vsyncpa [#allocation4], 0
    %s14 = scalar_lea.sflag [#allocation4], 1
    %15 = vsyncpa %s14, 0
    %16 = vsyncpa [#allocation9], 0
    %s17 = scalar_lea.sflag [#allocation9], 1
    %18 = vsyncpa %s17, 0
    loop: start=0, step=1, limit=6
    $region2: #{tpu_custom_call.1} parent=1 // loop_pre_header
      _
    $region3: #{tpu_custom_call.1} parent=1 // loop_header
      %s20 = sphi 0, %s24
      %p21 = scmp.ge.s32.totalorder %s20, 6
      %s30 = sphi 0, %s32
      %s33 = sphi 0, %s30
      %s34 = sphi 0, %s33
      %s50 = sphi 0, %s34
      %s54 = sphi 0, %s54
      %s56 = sphi 0, %s54
      %s57 = sphi 0, %s56
      %s71 = sphi 0, %s57
      %s77 = sphi 0, %s79
      %s80 = sphi 0, %s77
      %s81 = sphi 0, %s80
      %s97 = sphi 0, %s81
      %s103 = sphi 0, %s105
      %s106 = sphi 0, %s103
      %s107 = sphi 0, %s106
      %s123 = sphi 0, %s107
    $region4: #{tpu_custom_call.1} parent=1 // loop_header_branch
      %23 = sbr.rel (%p21) target = $region8
    $region5: #{tpu_custom_call.1} parent=1 // loop_body
      %s25 = ssub.s32 %s20, 1
      %s26 = ssub.s32 %s20, 2
      %s27 = sadd.s32 %s20, 1
      %s28 = ssub.s32 %s20, %s27
      %p29 = scmp.eq.s32.totalorder %s28, 0
      %s31 = sadd.s32 %s30, 1
      %s32 = scalar_select %p29, %s30, %s31
      %p35 = pneg %p29
      %p36 = scmp.eq.s32.totalorder %s20, 3
      %p37 = por %p35, %p36
      %p38 = scmp.ne.s32.totalorder %s30, %s33
      %p39 = scmp.eq.s32.totalorder %s20, 0
      %p40 = por %p38, %p39
      %p41 = scmp.ne.s32.totalorder %s30, %s33
      %p42 = scmp.eq.s32.totalorder %s25, 3
      %p43 = por %p41, %p42
      %p44 = scmp.ne.s32.totalorder %s33, %s34
      %p45 = scmp.eq.s32.totalorder %s25, 0
      %p46 = por %p44, %p45
      %p47 = scmp.ne.s32.totalorder %s33, %s34
      %p48 = scmp.eq.s32.totalorder %s26, 3
      %p49 = por %p47, %p48
      %p51 = scmp.ne.s32.totalorder %s34, %s50
      %p52 = scmp.eq.s32.totalorder %s26, 0
      %p53 = por %p51, %p52
      %s55 = sadd.s32 %s54, 1
      %p58 = scmp.eq.s32.totalorder %s20, 3
      %p59 = scmp.ne.s32.totalorder %s54, %s56
      %p60 = scmp.eq.s32.totalorder %s20, 0
      %p61 = por %p59, %p60
      %p62 = scmp.ne.s32.totalorder %s54, %s56
      %p63 = scmp.eq.s32.totalorder %s25, 3
      %p64 = por %p62, %p63
      %p65 = scmp.ne.s32.totalorder %s56, %s57
      %p66 = scmp.eq.s32.totalorder %s25, 0
      %p67 = por %p65, %p66
      %p68 = scmp.ne.s32.totalorder %s56, %s57
      %p69 = scmp.eq.s32.totalorder %s26, 3
      %p70 = por %p68, %p69
      %p72 = scmp.ne.s32.totalorder %s57, %s71
      %p73 = scmp.eq.s32.totalorder %s26, 0
      %p74 = por %p72, %p73
      %s75 = ssub.s32 %s20, %s27
      %p76 = scmp.eq.s32.totalorder %s75, 0
      %s78 = sadd.s32 %s77, 1
      %s79 = scalar_select %p76, %s77, %s78
      %p82 = pneg %p76
      %p83 = scmp.eq.s32.totalorder %s20, 3
      %p84 = por %p82, %p83
      %p85 = scmp.ne.s32.totalorder %s77, %s80
      %p86 = scmp.eq.s32.totalorder %s20, 0
      %p87 = por %p85, %p86
      %p88 = scmp.ne.s32.totalorder %s77, %s80
      %p89 = scmp.eq.s32.totalorder %s25, 3
      %p90 = por %p88, %p89
      %p91 = scmp.ne.s32.totalorder %s80, %s81
      %p92 = scmp.eq.s32.totalorder %s25, 0
      %p93 = por %p91, %p92
      %p94 = scmp.ne.s32.totalorder %s80, %s81
      %p95 = scmp.eq.s32.totalorder %s26, 3
      %p96 = por %p94, %p95
      %p98 = scmp.ne.s32.totalorder %s81, %s97
      %p99 = scmp.eq.s32.totalorder %s26, 0
      %p100 = por %p98, %p99
      %s101 = ssub.s32 %s20, %s27
      %p102 = scmp.eq.s32.totalorder %s101, 0
      %s104 = sadd.s32 %s103, 1
      %s105 = scalar_select %p102, %s103, %s104
      %p108 = pneg %p102
      %p109 = scmp.eq.s32.totalorder %s20, 3
      %p110 = por %p108, %p109
      %p111 = scmp.ne.s32.totalorder %s103, %s106
      %p112 = scmp.eq.s32.totalorder %s20, 0
      %p113 = por %p111, %p112
      %p114 = scmp.ne.s32.totalorder %s103, %s106
      %p115 = scmp.eq.s32.totalorder %s25, 3
      %p116 = por %p114, %p115
      %p117 = scmp.ne.s32.totalorder %s106, %s107
      %p118 = scmp.eq.s32.totalorder %s25, 0
      %p119 = por %p117, %p118
      %p120 = scmp.ne.s32.totalorder %s106, %s107
      %p121 = scmp.eq.s32.totalorder %s26, 3
      %p122 = por %p120, %p121
      %p124 = scmp.ne.s32.totalorder %s107, %s123
      %p125 = scmp.eq.s32.totalorder %s26, 0
      %p126 = por %p124, %p125
      %p127 = scmp.le.s32.totalorder 1, %s20
      %p128 = scmp.lt.s32.totalorder %s20, 5
      %p129 = pnand %p127, %p128
      %p130 = pneg %p129
      // Predicated region
      $region9: #{tpu_custom_call.1} parent=5 // pred_check
        _
      $region10: #{tpu_custom_call.1} parent=5 // pred_check_branch
        %132 = sbr.rel (%p129) target = $region12
      $region11: #{tpu_custom_call.1} parent=5 // pred_region
        %s133 = ssub.s32 %s20, 1
        // Predicated region
        $region13: #{tpu_custom_call.1} parent=11 // pred_check
          %p134 = pneg %p67
        $region14: #{tpu_custom_call.1} parent=11 // pred_check_branch
          %136 = sbr.rel (%p134) target = $region16
        $region15: #{tpu_custom_call.1} parent=11 // pred_region
          %s138 = ssub.s32 1024, 1024
          %139 = vsyncadd [#allocation6], %s138
          %s140 = sshll.u32 [#allocation5], 4
          %s141 = int_to_ptr.vmem [resolvable:$true] %s140
          %146 = dma.hbm_to_vmem [thread:$0]  %s1, 1024, %s141, [#allocation6], 64, 64, 4
        $region16: #{tpu_custom_call.1} parent=11 // pred_fallthru
          _
      $region12: #{tpu_custom_call.1} parent=5 // pred_fallthru
        _
      %p147 = scmp.lt.s32.totalorder %s20, 4
      // Predicated region
      $region17: #{tpu_custom_call.1} parent=5 // pred_check
        %p148 = pneg %p147
      $region18: #{tpu_custom_call.1} parent=5 // pred_check_branch
        %150 = sbr.rel (%p148) target = $region20
      $region19: #{tpu_custom_call.1} parent=5 // pred_region
        // Predicated region
        $region21: #{tpu_custom_call.1} parent=19 // pred_check
          %p151 = pneg %p40
        $region22: #{tpu_custom_call.1} parent=19 // pred_check_branch
          %153 = sbr.rel (%p151) target = $region24
        $region23: #{tpu_custom_call.1} parent=19 // pred_region
          %s154 = sand.u32 %s30, 1
          %s155 = scalar_lea.sflag [#allocation3], %s154
          %s156 = sand.u32 %s30, 1
          %s157 = smul.addr %s156, 64
          %s158 = scalar_lea.vmem [#allocation2], %s157
          %s159 = smul.u32 16, %s20
          %s161 = ssub.s32 1024, 1024
          %162 = vsyncadd %s155, %s161
          %s163 = smul.addr %s159, 64
          %s164 = scalar_lea.hbm %s0, %s163
          %s165 = sshll.u32 %s158, 4
          %s166 = int_to_ptr.vmem [resolvable:$true] %s165
          %171 = dma.hbm_to_vmem [thread:$0]  %s164, 1024, %s166, %s155, 64, 64, 4
        $region24: #{tpu_custom_call.1} parent=19 // pred_fallthru
          _
      $region20: #{tpu_custom_call.1} parent=5 // pred_fallthru
        _
      %p172 = scmp.le.s32.totalorder 1, %s20
      %p173 = scmp.lt.s32.totalorder %s20, 5
      %p174 = pnand %p172, %p173
      %p175 = pneg %p174
      // Predicated region
      $region25: #{tpu_custom_call.1} parent=5 // pred_check
        _
      $region26: #{tpu_custom_call.1} parent=5 // pred_check_branch
        %177 = sbr.rel (%p174) target = $region28
      $region27: #{tpu_custom_call.1} parent=5 // pred_region
        %s178 = ssub.s32 %s20, 1
        %s179 = sand.u32 %s33, 1
        %s180 = scalar_lea.sflag [#allocation3], %s179
        %s181 = sand.u32 %s33, 1
        %s182 = smul.addr %s181, 64
        %s183 = scalar_lea.vmem [#allocation2], %s182
        // Predicated region
        $region29: #{tpu_custom_call.1} parent=27 // pred_check
          %p184 = pneg %p46
        $region30: #{tpu_custom_call.1} parent=27 // pred_check_branch
          %186 = sbr.rel (%p184) target = $region32
        $region31: #{tpu_custom_call.1} parent=27 // pred_region
          %187 = dma.done %s180, 1024
        $region32: #{tpu_custom_call.1} parent=27 // pred_fallthru
          _
        // Predicated region
        $region33: #{tpu_custom_call.1} parent=27 // pred_check
          %p188 = pneg %p67
        $region34: #{tpu_custom_call.1} parent=27 // pred_check_branch
          %190 = sbr.rel (%p188) target = $region36
        $region35: #{tpu_custom_call.1} parent=27 // pred_region
          %191 = dma.done [#allocation6], 1024
        $region36: #{tpu_custom_call.1} parent=27 // pred_fallthru
          _
        %s192 = sand.u32 %s33, 1
        %s193 = scalar_lea.sflag [#allocation3], %s192
        %s194 = sand.u32 %s33, 1
        %s195 = smul.addr %s194, 64
        %s196 = scalar_lea.vmem [#allocation2], %s195
        %p197 = pneg %p46
        %p198 = pneg %p43
        %p199 = pneg %p67
        %p200 = pneg %p64
        %p201 = pneg %p93
        %p202 = pneg %p90
        %s203 = sand.u32 %s80, 1
        %s204 = scalar_lea.sflag [#allocation4], %s203
        %s205 = sand.u32 %s80, 1
        %s206 = smul.addr %s205, 64
        %s207 = scalar_lea.vmem [#allocation7], %s206
        %p208 = pneg %p119
        %p209 = pneg %p116
        %s210 = sand.u32 %s106, 1
        %s211 = scalar_lea.sflag [#allocation9], %s210
        %s212 = sand.u32 %s106, 1
        %s213 = smul.addr %s212, 2
        %s214 = scalar_lea.vmem [#allocation8], %s213
        %s215 = smul.u32 16, %s25
        %s216 = smul.u32 16, %s25
        %v218 = vld [vmem:[%s183] sm:$0xf]
        %v219 = vld [vmem:[%s183 + $0x4] sm:$0xf]
        %v220 = vld [vmem:[%s183 + $0x8] sm:$0xf]
        %v221 = vld [vmem:[%s183 + $0xc] sm:$0xf]
        %v222 = vld [vmem:[%s183 + $0x10] sm:$0xf]
        %v223 = vld [vmem:[%s183 + $0x14] sm:$0xf]
        %v224 = vld [vmem:[%s183 + $0x18] sm:$0xf]
        %v225 = vld [vmem:[%s183 + $0x1c] sm:$0xf]
        %v226 = vld [vmem:[%s183 + $0x20] sm:$0xf]
        %v227 = vld [vmem:[%s183 + $0x24] sm:$0xf]
        %v228 = vld [vmem:[%s183 + $0x28] sm:$0xf]
        %v229 = vld [vmem:[%s183 + $0x2c] sm:$0xf]
        %v230 = vld [vmem:[%s183 + $0x30] sm:$0xf]
        %v231 = vld [vmem:[%s183 + $0x34] sm:$0xf]
        %v232 = vld [vmem:[%s183 + $0x38] sm:$0xf]
        %v233 = vld [vmem:[%s183 + $0x3c] sm:$0xf]
        %v234 = vld [vmem:[#allocation5] sm:$0xf]
        %v235 = vld [vmem:[#allocation5 + $0x4] sm:$0xf]
        %v236 = vld [vmem:[#allocation5 + $0x8] sm:$0xf]
        %v237 = vld [vmem:[#allocation5 + $0xc] sm:$0xf]
        %v238 = vld [vmem:[#allocation5 + $0x10] sm:$0xf]
        %v239 = vld [vmem:[#allocation5 + $0x14] sm:$0xf]
        %v240 = vld [vmem:[#allocation5 + $0x18] sm:$0xf]
        %v241 = vld [vmem:[#allocation5 + $0x1c] sm:$0xf]
        %v242 = vld [vmem:[#allocation5 + $0x20] sm:$0xf]
        %v243 = vld [vmem:[#allocation5 + $0x24] sm:$0xf]
        %v244 = vld [vmem:[#allocation5 + $0x28] sm:$0xf]
        %v245 = vld [vmem:[#allocation5 + $0x2c] sm:$0xf]
        %v246 = vld [vmem:[#allocation5 + $0x30] sm:$0xf]
        %v247 = vld [vmem:[#allocation5 + $0x34] sm:$0xf]
        %v248 = vld [vmem:[#allocation5 + $0x38] sm:$0xf]
        %v249 = vld [vmem:[#allocation5 + $0x3c] sm:$0xf]
        %v266 = vunpack.c.l.b16 %v218
        %v267 = vunpack.c.l.b16 %v219
        %v268 = vunpack.c.l.b16 %v220
        %v269 = vunpack.c.l.b16 %v221
        %v270 = vunpack.c.l.b16 %v222
        %v271 = vunpack.c.l.b16 %v223
        %v272 = vunpack.c.l.b16 %v224
        %v273 = vunpack.c.l.b16 %v225
        %v274 = vunpack.c.l.b16 %v226
        %v275 = vunpack.c.l.b16 %v227
        %v276 = vunpack.c.l.b16 %v228
        %v277 = vunpack.c.l.b16 %v229
        %v278 = vunpack.c.l.b16 %v230
        %v279 = vunpack.c.l.b16 %v231
        %v280 = vunpack.c.l.b16 %v232
        %v281 = vunpack.c.l.b16 %v233
        %v282 = vpack.c.b16 %v267, %v266
        %v283 = vpack.c.b16 %v269, %v268
        %v284 = vpack.c.b16 %v271, %v270
        %v285 = vpack.c.b16 %v273, %v272
        %v286 = vpack.c.b16 %v275, %v274
        %v287 = vpack.c.b16 %v277, %v276
        %v288 = vpack.c.b16 %v279, %v278
        %v289 = vpack.c.b16 %v281, %v280
        %v314 = vunpack.c.l.b16 %v234
        %v315 = vunpack.c.l.b16 %v235
        %v316 = vunpack.c.l.b16 %v236
        %v317 = vunpack.c.l.b16 %v237
        %v318 = vunpack.c.l.b16 %v238
        %v319 = vunpack.c.l.b16 %v239
        %v320 = vunpack.c.l.b16 %v240
        %v321 = vunpack.c.l.b16 %v241
        %v322 = vunpack.c.l.b16 %v242
        %v323 = vunpack.c.l.b16 %v243
        %v324 = vunpack.c.l.b16 %v244
        %v325 = vunpack.c.l.b16 %v245
        %v326 = vunpack.c.l.b16 %v246
        %v327 = vunpack.c.l.b16 %v247
        %v328 = vunpack.c.l.b16 %v248
        %v329 = vunpack.c.l.b16 %v249
        %v330 = vpack.c.b16 %v315, %v314
        %v331 = vpack.c.b16 %v317, %v316
        %v332 = vpack.c.b16 %v319, %v318
        %v333 = vpack.c.b16 %v321, %v320
        %v334 = vpack.c.b16 %v323, %v322
        %v335 = vpack.c.b16 %v325, %v324
        %v336 = vpack.c.b16 %v327, %v326
        %v337 = vpack.c.b16 %v329, %v328
        %346 = vmatprep.subr.bf16.mxu0 0
        %347 = vmatpush1.bf16.msra.mxu0 %v330
        %348 = vmatprep.subr.bf16.mxu0 0
        %349 = vmatpush1.bf16.msra.mxu0 %v331
        %350 = vmatprep.subr.bf16.mxu0 0
        %351 = vmatpush1.bf16.msra.mxu0 %v332
        %352 = vmatprep.subr.bf16.mxu0 0
        %353 = vmatpush1.bf16.msra.mxu0 %v333
        %354 = vmatprep.subr.bf16.mxu0 0
        %355 = vmatpush1.bf16.msra.mxu0 %v334
        %356 = vmatprep.subr.bf16.mxu0 0
        %357 = vmatpush1.bf16.msra.mxu0 %v335
        %358 = vmatprep.subr.bf16.mxu0 0
        %359 = vmatpush1.bf16.msra.mxu0 %v336
        %360 = vmatprep.subr.bf16.mxu0 0
        %361 = vmatpush1.bf16.msra.mxu0 %v337
        %362 = vmatprep.subr.bf16.mxu0 0
        %363 = vmatpush1.bf16.msra.mxu0 0
        %364 = vmatprep.subr.bf16.mxu0 0
        %365 = vmatpush1.bf16.msra.mxu0 0
        %366 = vmatprep.subr.bf16.mxu0 0
        %367 = vmatpush1.bf16.msra.mxu0 0
        %368 = vmatprep.subr.bf16.mxu0 0
        %369 = vmatpush1.bf16.msra.mxu0 0
        %370 = vmatprep.subr.bf16.mxu0 0
        %371 = vmatpush1.bf16.msra.mxu0 0
        %372 = vmatprep.subr.bf16.mxu0 0
        %373 = vmatpush1.bf16.msra.mxu0 0
        %374 = vmatprep.subr.bf16.mxu0 0
        %375 = vmatpush1.bf16.msra.mxu0 0
        %376 = vmatprep.subr.bf16.mxu0 0
        %377 = vmatpush1.bf16.msra.mxu0 0
        %378 = vmatprep.mubr.bf16.mxu0 0
        %379 = vmatmul.mubr.bf16.gmra.mrb[0].mxu0 %v282
        %v380 = vpop.f32.mrb[0].mxu0
        %v381 = vadd.f32 0.0, %v380
        %v382 = vpop.f32.mrb[0].mxu0
        %v383 = vpop.f32.mrb[0].mxu0
        %v384 = vadd.f32 0.0, %v383
        %v385 = vpop.f32.mrb[0].mxu0
        %386 = vmatprep.mubr.bf16.mxu0 0
        %387 = vmatmul.mubr.bf16.gmra.mrb[0].mxu0 %v283
        %v388 = vpop.f32.mrb[0].mxu0
        %v389 = vadd.f32 0.0, %v388
        %v390 = vpop.f32.mrb[0].mxu0
        %v391 = vpop.f32.mrb[0].mxu0
        %v392 = vadd.f32 0.0, %v391
        %v393 = vpop.f32.mrb[0].mxu0
        %394 = vmatprep.mubr.bf16.mxu0 0
        %395 = vmatmul.mubr.bf16.gmra.mrb[0].mxu0 %v284
        %v396 = vpop.f32.mrb[0].mxu0
        %v397 = vadd.f32 0.0, %v396
        %v398 = vpop.f32.mrb[0].mxu0
        %v399 = vpop.f32.mrb[0].mxu0
        %v400 = vadd.f32 0.0, %v399
        %v401 = vpop.f32.mrb[0].mxu0
        %402 = vmatprep.mubr.bf16.mxu0 0
        %403 = vmatmul.mubr.bf16.gmra.mrb[0].mxu0 %v285
        %v404 = vpop.f32.mrb[0].mxu0
        %v405 = vadd.f32 0.0, %v404
        %v406 = vpop.f32.mrb[0].mxu0
        %v407 = vpop.f32.mrb[0].mxu0
        %v408 = vadd.f32 0.0, %v407
        %v409 = vpop.f32.mrb[0].mxu0
        %410 = vmatprep.mubr.bf16.mxu0 0
        %411 = vmatmul.mubr.bf16.gmra.mrb[0].mxu0 %v286
        %v412 = vpop.f32.mrb[0].mxu0
        %v413 = vadd.f32 0.0, %v412
        %v414 = vpop.f32.mrb[0].mxu0
        %v415 = vpop.f32.mrb[0].mxu0
        %v416 = vadd.f32 0.0, %v415
        %v417 = vpop.f32.mrb[0].mxu0
        %418 = vmatprep.mubr.bf16.mxu0 0
        %419 = vmatmul.mubr.bf16.gmra.mrb[0].mxu0 %v287
        %v420 = vpop.f32.mrb[0].mxu0
        %v421 = vadd.f32 0.0, %v420
        %v422 = vpop.f32.mrb[0].mxu0
        %v423 = vpop.f32.mrb[0].mxu0
        %v424 = vadd.f32 0.0, %v423
        %v425 = vpop.f32.mrb[0].mxu0
        %426 = vmatprep.mubr.bf16.mxu0 0
        %427 = vmatmul.mubr.bf16.gmra.mrb[0].mxu0 %v288
        %v428 = vpop.f32.mrb[0].mxu0
        %v429 = vadd.f32 0.0, %v428
        %v430 = vpop.f32.mrb[0].mxu0
        %v431 = vpop.f32.mrb[0].mxu0
        %v432 = vadd.f32 0.0, %v431
        %v433 = vpop.f32.mrb[0].mxu0
        %434 = vmatprep.mubr.bf16.mxu0 0
        %435 = vmatmul.mubr.bf16.gmra.mrb[0].mxu0 %v289
        %v436 = vpop.f32.mrb[0].mxu0
        %v437 = vadd.f32 0.0, %v436
        %v438 = vpop.f32.mrb[0].mxu0
        %v439 = vpop.f32.mrb[0].mxu0
        %v440 = vadd.f32 0.0, %v439
        %v441 = vpop.f32.mrb[0].mxu0
        %442 = vdwg.mxu0
        %v443 = vpack.c.bf16 %v384, %v381
        %v444 = vpack.c.bf16 %v392, %v389
        %v445 = vpack.c.bf16 %v400, %v397
        %v446 = vpack.c.bf16 %v408, %v405
        %v447 = vpack.c.bf16 %v416, %v413
        %v448 = vpack.c.bf16 %v424, %v421
        %v449 = vpack.c.bf16 %v432, %v429
        %v450 = vpack.c.bf16 %v440, %v437
        %v459 = vunpack.c.l.b16 %v443
        %v460 = vunpack.c.h.b16 %v443
        %v461 = vunpack.c.l.b16 %v444
        %v462 = vunpack.c.h.b16 %v444
        %v463 = vunpack.c.l.b16 %v445
        %v464 = vunpack.c.h.b16 %v445
        %v465 = vunpack.c.l.b16 %v446
        %v466 = vunpack.c.h.b16 %v446
        %v467 = vunpack.c.l.b16 %v447
        %v468 = vunpack.c.h.b16 %v447
        %v469 = vunpack.c.l.b16 %v448
        %v470 = vunpack.c.h.b16 %v448
        %v471 = vunpack.c.l.b16 %v449
        %v472 = vunpack.c.h.b16 %v449
        %v473 = vunpack.c.l.b16 %v450
        %v474 = vunpack.c.h.b16 %v450
        %v475 = vpack.c.b16 %v459, %v459
        %v476 = vpack.c.b16 %v460, %v460
        %v477 = vpack.c.b16 %v461, %v461
        %v478 = vpack.c.b16 %v462, %v462
        %v479 = vpack.c.b16 %v463, %v463
        %v480 = vpack.c.b16 %v464, %v464
        %v481 = vpack.c.b16 %v465, %v465
        %v482 = vpack.c.b16 %v466, %v466
        %v483 = vpack.c.b16 %v467, %v467
        %v484 = vpack.c.b16 %v468, %v468
        %v485 = vpack.c.b16 %v469, %v469
        %v486 = vpack.c.b16 %v470, %v470
        %v487 = vpack.c.b16 %v471, %v471
        %v488 = vpack.c.b16 %v472, %v472
        %v489 = vpack.c.b16 %v473, %v473
        %v490 = vpack.c.b16 %v474, %v474
        %507 = vst [vmem:[%s207] sm:$0xf] %v475
        %508 = vst [vmem:[%s207 + $0x4] sm:$0xf] %v476
        %509 = vst [vmem:[%s207 + $0x8] sm:$0xf] %v477
        %510 = vst [vmem:[%s207 + $0xc] sm:$0xf] %v478
        %511 = vst [vmem:[%s207 + $0x10] sm:$0xf] %v479
        %512 = vst [vmem:[%s207 + $0x14] sm:$0xf] %v480
        %513 = vst [vmem:[%s207 + $0x18] sm:$0xf] %v481
        %514 = vst [vmem:[%s207 + $0x1c] sm:$0xf] %v482
        %515 = vst [vmem:[%s207 + $0x20] sm:$0xf] %v483
        %516 = vst [vmem:[%s207 + $0x24] sm:$0xf] %v484
        %517 = vst [vmem:[%s207 + $0x28] sm:$0xf] %v485
        %518 = vst [vmem:[%s207 + $0x2c] sm:$0xf] %v486
        %519 = vst [vmem:[%s207 + $0x30] sm:$0xf] %v487
        %520 = vst [vmem:[%s207 + $0x34] sm:$0xf] %v488
        %521 = vst [vmem:[%s207 + $0x38] sm:$0xf] %v489
        %522 = vst [vmem:[%s207 + $0x3c] sm:$0xf] %v490
        %v523 = vadd.f32 %v381, %v384
        %v524 = vadd.f32 %v523, %v389
        %v525 = vadd.f32 %v524, %v392
        %v526 = vadd.f32 %v525, %v397
        %v527 = vadd.f32 %v526, %v400
        %v528 = vadd.f32 %v527, %v405
        %v529 = vadd.f32 %v528, %v408
        %v530 = vadd.f32 %v529, %v413
        %v531 = vadd.f32 %v530, %v416
        %v532 = vadd.f32 %v531, %v421
        %v533 = vadd.f32 %v532, %v424
        %v534 = vadd.f32 %v533, %v429
        %v535 = vadd.f32 %v534, %v432
        %v536 = vadd.f32 %v535, %v437
        %v537 = vadd.f32 %v536, %v440
        %v538 = vrot.slane %v537, 4
        %v539 = vadd.f32 %v537, %v538
        %v540 = vrot.slane %v539, 2
        %v541 = vadd.f32 %v539, %v540
        %v542 = vrot.slane %v541, 1
        %v543 = vadd.f32 %v541, %v542
        %v544 = vmul.f32 %v381, %v381
        %v545 = vmul.f32 %v384, %v384
        %v546 = vmul.f32 %v389, %v389
        %v547 = vmul.f32 %v392, %v392
        %v548 = vmul.f32 %v397, %v397
        %v549 = vmul.f32 %v400, %v400
        %v550 = vmul.f32 %v405, %v405
        %v551 = vmul.f32 %v408, %v408
        %v552 = vmul.f32 %v413, %v413
        %v553 = vmul.f32 %v416, %v416
        %v554 = vmul.f32 %v421, %v421
        %v555 = vmul.f32 %v424, %v424
        %v556 = vmul.f32 %v429, %v429
        %v557 = vmul.f32 %v432, %v432
        %v558 = vmul.f32 %v437, %v437
        %v559 = vmul.f32 %v440, %v440
        %v560 = vadd.f32 %v544, %v545
        %v561 = vadd.f32 %v560, %v546
        %v562 = vadd.f32 %v561, %v547
        %v563 = vadd.f32 %v562, %v548
        %v564 = vadd.f32 %v563, %v549
        %v565 = vadd.f32 %v564, %v550
        %v566 = vadd.f32 %v565, %v551
        %v567 = vadd.f32 %v566, %v552
        %v568 = vadd.f32 %v567, %v553
        %v569 = vadd.f32 %v568, %v554
        %v570 = vadd.f32 %v569, %v555
        %v571 = vadd.f32 %v570, %v556
        %v572 = vadd.f32 %v571, %v557
        %v573 = vadd.f32 %v572, %v558
        %v574 = vadd.f32 %v573, %v559
        %v575 = vrot.slane %v574, 4
        %v576 = vadd.f32 %v574, %v575
        %v577 = vrot.slane %v576, 2
        %v578 = vadd.f32 %v576, %v577
        %v579 = vrot.slane %v578, 1
        %v580 = vadd.f32 %v578, %v579
        %vm581 = vcmask 1040384
        %v582 = vsel %vm581, %v543, %v580
        %583 = vst [vmem:[%s214] sm:$0x3] %v582
        %s584 = sand.u32 %s80, 1
        %s585 = scalar_lea.sflag [#allocation4], %s584
        %s586 = sand.u32 %s80, 1
        %s587 = smul.addr %s586, 64
        %s588 = scalar_lea.vmem [#allocation7], %s587
        %s589 = sand.u32 %s106, 1
        %s590 = scalar_lea.sflag [#allocation9], %s589
        %s591 = sand.u32 %s106, 1
        %s592 = smul.addr %s591, 2
        %s593 = scalar_lea.vmem [#allocation8], %s592
        // Predicated region
        $region37: #{tpu_custom_call.1} parent=27 // pred_check
          %p594 = pneg %p90
        $region38: #{tpu_custom_call.1} parent=27 // pred_check_branch
          %596 = sbr.rel (%p594) target = $region40
        $region39: #{tpu_custom_call.1} parent=27 // pred_region
          %s597 = smul.u32 16, %s25
          %s599 = ssub.s32 1024, 1024
          %600 = vsyncadd %s585, %s599
          %s601 = smul.addr %s597, 64
          %s602 = scalar_lea.hbm %s2, %s601
          %s603 = sshll.u32 %s588, 4
          %s604 = int_to_ptr.vmem [resolvable:$true] %s603
          %609 = dma.vmem_to_hbm [thread:$0]  %s604, 1024, %s602, %s585, 64, 64, 4
        $region40: #{tpu_custom_call.1} parent=27 // pred_fallthru
          _
        // Predicated region
        $region41: #{tpu_custom_call.1} parent=27 // pred_check
          %p610 = pneg %p116
        $region42: #{tpu_custom_call.1} parent=27 // pred_check_branch
          %612 = sbr.rel (%p610) target = $region44
        $region43: #{tpu_custom_call.1} parent=27 // pred_region
          %s614 = ssub.s32 32, 32
          %615 = vsyncadd %s590, %s614
          %s616 = smul.addr %s25, 32
          %s617 = scalar_lea.hbm %s3, %s616
          %s619 = sshll.u32 %s593, 4
          %s620 = int_to_ptr.vmem [resolvable:$true] %s619
          %622 = dma.vmem_to_hbm [thread:$0]  %s620, 32, %s617, %s590
        $region44: #{tpu_custom_call.1} parent=27 // pred_fallthru
          _
      $region28: #{tpu_custom_call.1} parent=5 // pred_fallthru
        _
      %p623 = scmp.le.s32.totalorder 2, %s20
      // Predicated region
      $region45: #{tpu_custom_call.1} parent=5 // pred_check
        %p624 = pneg %p623
      $region46: #{tpu_custom_call.1} parent=5 // pred_check_branch
        %626 = sbr.rel (%p624) target = $region48
      $region47: #{tpu_custom_call.1} parent=5 // pred_region
        %s627 = ssub.s32 %s20, 2
        // Predicated region
        $region49: #{tpu_custom_call.1} parent=47 // pred_check
          %p628 = pneg %p96
        $region50: #{tpu_custom_call.1} parent=47 // pred_check_branch
          %630 = sbr.rel (%p628) target = $region52
        $region51: #{tpu_custom_call.1} parent=47 // pred_region
          %s631 = sand.u32 %s81, 1
          %s632 = scalar_lea.sflag [#allocation4], %s631
          %s633 = sand.u32 %s81, 1
          %s634 = smul.addr %s633, 64
          %s635 = scalar_lea.vmem [#allocation7], %s634
          %636 = dma.done %s632, 1024
        $region52: #{tpu_custom_call.1} parent=47 // pred_fallthru
          _
        // Predicated region
        $region53: #{tpu_custom_call.1} parent=47 // pred_check
          %p637 = pneg %p122
        $region54: #{tpu_custom_call.1} parent=47 // pred_check_branch
          %639 = sbr.rel (%p637) target = $region56
        $region55: #{tpu_custom_call.1} parent=47 // pred_region
          %s640 = sand.u32 %s107, 1
          %s641 = scalar_lea.sflag [#allocation9], %s640
          %s642 = sand.u32 %s107, 1
          %s643 = smul.addr %s642, 2
          %s644 = scalar_lea.vmem [#allocation8], %s643
          %645 = dma.done %s641, 32
        $region56: #{tpu_custom_call.1} parent=47 // pred_fallthru
          _
      $region48: #{tpu_custom_call.1} parent=5 // pred_fallthru
        _
    $region6: #{tpu_custom_call.1} parent=1 // loop_footer
      %s24 = sadd.s32 1, %s20
    $region7: #{tpu_custom_call.1} parent=1 // loop_footer_branch
      %19 = sbr.rel target = $region3
    $region8: #{tpu_custom_call.1} parent=1 // loop_exit
      _
    %646 = vsyncpa [#allocation3], 1
    %s647 = scalar_lea.sflag [#allocation3], 1
    %648 = vsyncpa %s647, 1
    %649 = vsyncpa [#allocation6], 1
    %650 = vsyncpa [#allocation4], 1
    %s651 = scalar_lea.sflag [#allocation4], 1
    %652 = vsyncpa %s651, 1
    %653 = vsyncpa [#allocation9], 1
    %s654 = scalar_lea.sflag [#allocation9], 1
    %655 = vsyncpa %s654, 1

</llo_original>
